<compile_context>
chip_gen: v6e
topology: v6e:2x2x1
jax: 0.10.0
libtpu: 0.0.40
codegen_flags: <defaults>
</compile_context>

<pallas_src>
import functools

import jax
import jax.numpy as jnp
from jax.experimental import pallas as pl
from jax.experimental.pallas import tpu as pltpu


# ----------------------------------------------------------------------------
# Kernels
# ----------------------------------------------------------------------------

def se_mono_kernel(x_ref, w1_ref, w2_ref, o_ref, *, inv_hw):
    """One grid step = `b_blk` whole batch elements (squeeze + excite + scale).

    x_ref  : (b_blk, C, HW)   activations (lane axis = HW)
    w1_ref : (C, Cr)          FC1 weight (transposed PyTorch layout), f32
    w2_ref : (Cr, C)          FC2 weight (transposed PyTorch layout), f32
    o_ref  : (b_blk, C, HW)
    """
    x = x_ref[...]
    # Squeeze: per-channel global average pool.  Sum in f32, scale by 1/HW in
    # f32 afterwards so bf16 activations still match the f32-mean reference.
    pooled = jnp.sum(x.astype(jnp.float32), axis=-1) * inv_hw          # (b, C)
    # Excitation: FC -> ReLU -> FC -> Sigmoid (tiny, f32 on the MXU).
    h = jnp.maximum(
        jnp.dot(pooled, w1_ref[...], preferred_element_type=jnp.float32), 0.0)
    s = jax.nn.sigmoid(
        jnp.dot(h, w2_ref[...], preferred_element_type=jnp.float32))   # (b, C)
    # Scale: lane-broadcast multiply in the activation dtype (fused, no large
    # f32 gate intermediate).
    o_ref[...] = (x * s.astype(x.dtype)[:, :, None]).astype(o_ref.dtype)


def se_pool_kernel(x_ref, w1_ref, w2_ref, s_ref, acc_ref, *, inv_hw):
    """Chunked pass 1: accumulate per-channel sums over HW chunks; on the last
    chunk run the excitation and emit the per-channel gate.

    x_ref  : (b_blk, C, hw_chunk)
    s_ref  : (b_blk, C, 1)   f32 gate output (accumulator-style block)
    acc_ref: (b_blk, C)      f32 VMEM scratch
    """
    j = pl.program_id(1)

    @pl.when(j == 0)
    def _():
        acc_ref[...] = jnp.zeros_like(acc_ref)

    acc_ref[...] += jnp.sum(x_ref[...].astype(jnp.float32), axis=-1)

    @pl.when(j == pl.num_programs(1) - 1)
    def _():
        pooled = acc_ref[...] * inv_hw                                 # (b, C)
        h = jnp.maximum(
            jnp.dot(pooled, w1_ref[...],
                    preferred_element_type=jnp.float32), 0.0)
        s = jax.nn.sigmoid(
            jnp.dot(h, w2_ref[...], preferred_element_type=jnp.float32))
        s_ref[...] = s[:, :, None]


def se_scale_kernel(s_ref, x_ref, o_ref):
    """Chunked pass 2: re-stream HW chunks, applying the per-channel gate."""
    x = x_ref[...]                                   # (b_blk, C, hw_chunk)
    o_ref[...] = (x * s_ref[...].astype(x.dtype)).astype(o_ref.dtype)


# ----------------------------------------------------------------------------
# Sizing helpers
# ----------------------------------------------------------------------------

def _vmem_limit_bytes():
    """64 MiB on 128 MiB-VMEM chips (v5e/v6e), ~48 MiB on v7x (64 MiB VMEM)."""
    try:
        cap = int(pltpu.get_tpu_info().vmem_capacity_bytes)
    except Exception:  # query unavailable -> assume 128 MiB physical
        cap = 128 * 1024 * 1024
    return min(64 * 1024 * 1024, (cap * 3) // 4)


def _divisors(n):
    return [d for d in range(1, n + 1) if n % d == 0]


def _pick_batch_block(B, bytes_per_batch, max_block_bytes,
                      target_bytes=8 << 20):
    """Largest batch block that (a) keeps the x block within the per-step
    budget, (b) leaves >=2 parallel grid steps when possible (v7x has 2
    TensorCores), and (c) stays near `target_bytes` (amortizes the ~0.35 us
    per-grid-step overhead; ~85% HBM roofline regime on v6e).
    Returns None if even a single batch element does not fit (caller should
    use the chunked two-phase path)."""
    target = min(target_bytes, max_block_bytes)
    feasible = [d for d in _divisors(B) if d * bytes_per_batch <= max_block_bytes]
    if not feasible:
        return None
    multi = [d for d in feasible if B // d >= 2]
    cands = multi if multi else feasible
    under = [d for d in cands if d * bytes_per_batch <= target]
    return max(under) if under else min(cands)


def _pick_hw_chunk(HW, bytes_per_hw_col, max_block_bytes):
    """Lane-dense HW chunk: a multiple of 128 dividing HW (full-width vst),
    as large as fits the block budget."""
    cands = [c for c in range(128, HW + 1, 128) if HW % c == 0]
    if not cands:
        # TODO(synk): HW with no multiple-of-128 divisor needs padded or
        # BoundedSlice ragged chunks; fall back to the full HW extent.
        return HW
    feasible = [c for c in cands if c * bytes_per_hw_col <= max_block_bytes]
    return max(feasible) if feasible else min(cands)


# ----------------------------------------------------------------------------
# Wrappers
# ----------------------------------------------------------------------------

def _se_monolithic(x3, w1, w2, *, b_blk, inv_hw, vmem_limit):
    B, C, HW = x3.shape
    Cr = w1.shape[1]
    grid = (B // b_blk,)
    kernel = functools.partial(se_mono_kernel, inv_hw=inv_hw)
    return pl.pallas_call(
        kernel,
        out_shape=jax.ShapeDtypeStruct((B, C, HW), x3.dtype),
        grid_spec=pltpu.PrefetchScalarGridSpec(
            num_scalar_prefetch=0,
            grid=grid,
            in_specs=[
                pl.BlockSpec((b_blk, C, HW), lambda i: (i, 0, 0)),  # x block
                pl.BlockSpec((C, Cr), lambda i: (0, 0)),            # W1 (resident)
                pl.BlockSpec((Cr, C), lambda i: (0, 0)),            # W2 (resident)
            ],
            out_specs=pl.BlockSpec((b_blk, C, HW), lambda i: (i, 0, 0)),
        ),
        compiler_params=pltpu.CompilerParams(
            dimension_semantics=("parallel",),
            vmem_limit_bytes=vmem_limit,
        ),
    )(x3, w1, w2)


def _se_chunked(x3, w1, w2, *, inv_hw, max_block_bytes, vmem_limit):
    B, C, HW = x3.shape
    Cr = w1.shape[1]
    itemsize = x3.dtype.itemsize
    b_blk = 1
    hw_chunk = _pick_hw_chunk(HW, b_blk * C * itemsize, max_block_bytes)
    nb, nchunks = B // b_blk, HW // hw_chunk

    # Pass 1: per-channel sums over HW chunks + excitation in the finalize.
    pool_kernel = functools.partial(se_pool_kernel, inv_hw=inv_hw)
    s = pl.pallas_call(
        pool_kernel,
        out_shape=jax.ShapeDtypeStruct((B, C, 1), jnp.float32),
        grid_spec=pltpu.PrefetchScalarGridSpec(
            num_scalar_prefetch=0,
            grid=(nb, nchunks),
            in_specs=[
                pl.BlockSpec((b_blk, C, hw_chunk), lambda i, j: (i, 0, j)),
                pl.BlockSpec((C, Cr), lambda i, j: (0, 0)),
                pl.BlockSpec((Cr, C), lambda i, j: (0, 0)),
            ],
            out_specs=pl.BlockSpec((b_blk, C, 1), lambda i, j: (i, 0, 0)),
            scratch_shapes=[pltpu.VMEM((b_blk, C), jnp.float32)],
        ),
        compiler_params=pltpu.CompilerParams(
            dimension_semantics=("parallel", "arbitrary"),
            vmem_limit_bytes=vmem_limit,
        ),
    )(x3, w1, w2)

    # Pass 2: re-stream the chunks, applying the per-channel gate.
    out = pl.pallas_call(
        se_scale_kernel,
        out_shape=jax.ShapeDtypeStruct((B, C, HW), x3.dtype),
        grid_spec=pltpu.PrefetchScalarGridSpec(
            num_scalar_prefetch=0,
            grid=(nb, nchunks),
            in_specs=[
                pl.BlockSpec((b_blk, C, 1), lambda i, j: (i, 0, 0)),
                pl.BlockSpec((b_blk, C, hw_chunk), lambda i, j: (i, 0, j)),
            ],
            out_specs=pl.BlockSpec((b_blk, C, hw_chunk), lambda i, j: (i, 0, j)),
        ),
        compiler_params=pltpu.CompilerParams(
            dimension_semantics=("parallel", "parallel"),
            vmem_limit_bytes=vmem_limit,
        ),
    )(s, x3)
    return out


def se_layer(x, w1, w2, *, b_blk=None, max_block_bytes=None):
    """SELayer forward.  x: (B, C, H, W) NCHW; w1: (C, C//r); w2: (C//r, C)."""
    B, C, H, W = x.shape
    HW = H * W
    Cr = w1.shape[1]
    assert w1.shape == (C, Cr) and w2.shape == (Cr, C)

    x3 = x.reshape(B, C, HW)               # contiguous NCHW flatten; free
    w1f = w1.astype(jnp.float32)           # excitation runs in f32
    w2f = w2.astype(jnp.float32)
    inv_hw = 1.0 / float(HW)               # applied in f32 after the reduce

    vmem_limit = _vmem_limit_bytes()
    if max_block_bytes is None:
        # x block and output block are each double-buffered (~4x the block),
        # plus resident weights and compiler scratch -> keep the block itself
        # to ~1/6 of the VMEM limit.
        max_block_bytes = vmem_limit // 6
    bytes_per_batch = C * HW * x.dtype.itemsize

    if b_blk is None:
        b_blk = _pick_batch_block(B, bytes_per_batch, max_block_bytes)
    else:
        assert B % b_blk == 0

    if b_blk is not None:
        out3 = _se_monolithic(x3, w1f, w2f, b_blk=b_blk, inv_hw=inv_hw,
                              vmem_limit=vmem_limit)
    else:
        out3 = _se_chunked(x3, w1f, w2f, inv_hw=inv_hw,
                           max_block_bytes=max_block_bytes,
                           vmem_limit=vmem_limit)
    return out3.reshape(B, C, H, W)


def se_layer_ref(x, w1, w2):
    """Pure-JAX reference matching the PyTorch forward."""
    pooled = jnp.mean(x, axis=(2, 3))                    # (B, C)
    h = jnp.maximum(pooled @ w1, 0.0)                    # (B, C//r)
    s = jax.nn.sigmoid(h @ w2)                           # (B, C)
    return x * s[:, :, None, None]


if __name__ == "__main__":
    key = jax.random.PRNGKey(0)

    # ---- Config 1: module defaults (channel=32, reduction=16), monolithic ----
    B, C, H, W = 4, 32, 8, 8
    reduction = 16
    Cr = C // reduction

    kx, k1, k2, kx2 = jax.random.split(key, 4)
    x = jax.random.normal(kx, (B, C, H, W), dtype=jnp.float32)
    # nn.Linear(channel, channel//reduction, bias=False) weight is (Cr, C);
    # we store its transpose so the kernel does pooled @ w1 directly.
    w1 = jax.random.normal(k1, (C, Cr), dtype=jnp.float32) * (1.0 / jnp.sqrt(C))
    w2 = jax.random.normal(k2, (Cr, C), dtype=jnp.float32) * (1.0 / jnp.sqrt(Cr))

    out = jax.block_until_ready(se_layer(x, w1, w2))
    ref = se_layer_ref(x, w1, w2)
    assert out.shape == (B, C, H, W)
    assert jnp.allclose(out, ref, atol=1e-4, rtol=1e-4)

    # ---- Config 2: exercise the two-phase chunked path (tiny block budget) ----
    B2, H2, W2 = 2, 16, 16                               # HW = 256 -> 2 chunks of 128
    x2 = jax.random.normal(kx2, (B2, C, H2, W2), dtype=jnp.float32)
    out2 = jax.block_until_ready(
        se_layer(x2, w1, w2, max_block_bytes=16 * 1024))
    ref2 = se_layer_ref(x2, w1, w2)
    assert out2.shape == (B2, C, H2, W2)
    assert jnp.allclose(out2, ref2, atol=1e-4, rtol=1e-4)

    print("KERNEL_OK")
</pallas_src>

<mosaic_0001>
module attributes {stable_mosaic.version = 11 : i64} {
  func.func @se_mono_kernel(%arg0: i32, %arg1: memref<2x32x64xf32, #tpu.memory_space<vmem>>, %arg2: memref<32x2xf32, #tpu.memory_space<vmem>>, %arg3: memref<2x32xf32, #tpu.memory_space<vmem>>, %arg4: memref<2x32x64xf32, #tpu.memory_space<vmem>>) attributes {dimension_semantics = [#tpu.dimension_semantics<parallel>], iteration_bounds = array<i64: 2>, scalar_prefetch = 0 : i64, scratch_operands = 0 : i64, tpu.core_type = #tpu.core_type<tc>, window_params = [{transform_indices = @transform_0, window_bounds = array<i64: 2, 32, 64>}, {pipeline_mode = #tpu.pipeline_mode<synchronous>, transform_indices = @transform_1, window_bounds = array<i64: 32, 2>}, {pipeline_mode = #tpu.pipeline_mode<synchronous>, transform_indices = @transform_2, window_bounds = array<i64: 2, 32>}, {transform_indices = @transform_3, window_bounds = array<i64: 2, 32, 64>}]} {
    %c0 = arith.constant 0 : index
    %c0_0 = arith.constant 0 : index
    %c0_1 = arith.constant 0 : index
    %0 = vector.load %arg1[%c0, %c0_0, %c0_1] : memref<2x32x64xf32, #tpu.memory_space<vmem>>, vector<2x32x64xf32>
    %cst = arith.constant dense<0.000000e+00> : vector<2x32xf32>
    %1 = vector.multi_reduction <add>, %0, %cst [2] : vector<2x32x64xf32> to vector<2x32xf32>
    %cst_2 = arith.constant 1.562500e-02 : f32
    %2 = vector.broadcast %cst_2 : f32 to vector<2x32xf32>
    %3 = arith.mulf %1, %2 : vector<2x32xf32>
    %c0_3 = arith.constant 0 : index
    %c0_4 = arith.constant 0 : index
    %4 = vector.load %arg2[%c0_3, %c0_4] : memref<32x2xf32, #tpu.memory_space<vmem>>, vector<32x2xf32>
    %cst_5 = arith.constant dense<0.000000e+00> : vector<2x2xf32>
    %5 = tpu.matmul %3, %4, %cst_5 {dimension_numbers = #tpu.dot_dimension_numbers<[1], [0], [0], [1], [0, 0, 1, 1], [], []>} : vector<2x32xf32>, vector<32x2xf32>, vector<2x2xf32> -> vector<2x2xf32>
    %cst_6 = arith.constant 0.000000e+00 : f32
    %6 = vector.broadcast %cst_6 : f32 to vector<2x2xf32>
    %7 = arith.maximumf %5, %6 : vector<2x2xf32>
    %c0_7 = arith.constant 0 : index
    %c0_8 = arith.constant 0 : index
    %8 = vector.load %arg3[%c0_7, %c0_8] : memref<2x32xf32, #tpu.memory_space<vmem>>, vector<2x32xf32>
    %cst_9 = arith.constant dense<0.000000e+00> : vector<2x32xf32>
    %9 = tpu.matmul %7, %8, %cst_9 {dimension_numbers = #tpu.dot_dimension_numbers<[1], [0], [0], [1], [0, 0, 1, 1], [], []>} : vector<2x2xf32>, vector<2x32xf32>, vector<2x32xf32> -> vector<2x32xf32>
    %10 = arith.negf %9 : vector<2x32xf32>
    %11 = math.exp %10 : vector<2x32xf32>
    %cst_10 = arith.constant 1.000000e+00 : f32
    %12 = vector.broadcast %cst_10 : f32 to vector<2x32xf32>
    %13 = arith.addf %12, %11 : vector<2x32xf32>
    %14 = arith.divf %12, %13 : vector<2x32xf32>
    %15 = vector.shape_cast %14 : vector<2x32xf32> to vector<2x32x1xf32>
    %16 = vector.broadcast %15 : vector<2x32x1xf32> to vector<2x32x64xf32>
    %17 = arith.mulf %0, %16 : vector<2x32x64xf32>
    %c0_11 = arith.constant 0 : index
    %c0_12 = arith.constant 0 : index
    %c0_13 = arith.constant 0 : index
    %18 = vector.load %arg4[%c0_11, %c0_12, %c0_13] : memref<2x32x64xf32, #tpu.memory_space<vmem>>, vector<2x32x64xf32>
    tpu.vector_store %arg4[%c0_11, %c0_12, %c0_13], %17 {strides = array<i32>} : memref<2x32x64xf32, #tpu.memory_space<vmem>>, vector<2x32x64xf32>,
    return
  }
  func.func @transform_0(%arg0: i32) -> (i32, i32, i32) {
    %c0_i32 = arith.constant 0 : i32
    %c0_i32_0 = arith.constant 0 : i32
    %c0_i32_1 = arith.constant 0 : i32
    return %arg0, %c0_i32, %c0_i32_0 : i32, i32, i32
  }
  func.func @transform_1(%arg0: i32) -> (i32, i32) {
    %c0_i32 = arith.constant 0 : i32
    %c0_i32_0 = arith.constant 0 : i32
    %c0_i32_1 = arith.constant 0 : i32
    return %c0_i32, %c0_i32_0 : i32, i32
  }
  func.func @transform_2(%arg0: i32) -> (i32, i32) {
    %c0_i32 = arith.constant 0 : i32
    %c0_i32_0 = arith.constant 0 : i32
    %c0_i32_1 = arith.constant 0 : i32
    return %c0_i32, %c0_i32_0 : i32, i32
  }
  func.func @transform_3(%arg0: i32) -> (i32, i32, i32) {
    %c0_i32 = arith.constant 0 : i32
    %c0_i32_0 = arith.constant 0 : i32
    %c0_i32_1 = arith.constant 0 : i32
    return %arg0, %c0_i32, %c0_i32_0 : i32, i32, i32
  }
}

</mosaic_0001>

<llo_original>
// kernel: tpu_custom_call.1
$region0: #{tpu_custom_call.1}
  #allocation0 [shape = 'u32[]', space=smem, size = 0x4, offset = 0x4, fixed_abs, tag = 'smem constant byte address 0x4 - core index']
  #allocation1 [shape = 'u32[144,128]{1,0:T(1,128)}', space=vmem, size = 0x12000, scoped, tag = 'internal scratch']
  %s0 = inlined_call_operand.hbm [shape: f32[4,32,64], index: 0, kind: input, shape index: {}]
  %s1 = inlined_call_operand.vmem [shape: f32[32,2], index: 1, kind: input, shape index: {}]
  %s2 = inlined_call_operand.vmem [shape: f32[2,32], index: 2, kind: input, shape index: {}]
  %s3 = inlined_call_operand.hbm [shape: f32[4,32,64], index: 3, kind: output, shape index: {}]
  %s4 = sld [smem:[#allocation0]]
  $region49: #{tpu_custom_call.1} parent=0
    _
  %s6 = ssub.s32 1, %s4
  %s7 = scalar_select 0, %s6, %s4
  $region1: #{tpu_custom_call.1} parent=0
    #allocation2 [shape = 'u8[65536]{0}', space=vmem, size = 0x10000, scoped, tag = 'input window, operand 0']
    #allocation3 [shape = 's32[2]{0}', space=sflag, size = 0x8, scoped, tag = 'scoped memory for tpu_custom_call.1']
    #allocation4 [shape = 's32[2]{0}', space=sflag, size = 0x8, scoped, tag = 'scoped memory for tpu_custom_call.1']
    #allocation5 [shape = 'u8[65536]{0}', space=vmem, size = 0x10000, scoped, tag = 'output window, operand 0']
    %8 = vsyncpa [#allocation3], 0
    %s9 = scalar_lea.sflag [#allocation3], 1
    %10 = vsyncpa %s9, 0
    %11 = vsyncpa [#allocation4], 0
    %s12 = scalar_lea.sflag [#allocation4], 1
    %13 = vsyncpa %s12, 0
    loop: start=0, step=1, limit=4
    $region2: #{tpu_custom_call.1} parent=1 // loop_pre_header
      _
    $region3: #{tpu_custom_call.1} parent=1 // loop_header
      %s15 = sphi 0, %s19
      %p16 = scmp.ge.s32.totalorder %s15, 4
      %s25 = sphi 0, %s27
      %s28 = sphi 0, %s25
      %s29 = sphi 0, %s28
      %s45 = sphi 0, %s29
      %s49 = sphi 0, %s49
      %s51 = sphi 0, %s49
      %s52 = sphi 0, %s51
      %s66 = sphi 0, %s52
      %s70 = sphi 0, %s70
      %s72 = sphi 0, %s70
      %s73 = sphi 0, %s72
      %s87 = sphi 0, %s73
      %s93 = sphi 0, %s95
      %s96 = sphi 0, %s93
      %s97 = sphi 0, %s96
      %s113 = sphi 0, %s97
    $region4: #{tpu_custom_call.1} parent=1 // loop_header_branch
      %18 = sbr.rel (%p16) target = $region8
    $region5: #{tpu_custom_call.1} parent=1 // loop_body
      %s20 = ssub.s32 %s15, 1
      %s21 = ssub.s32 %s15, 2
      %s22 = sadd.s32 %s15, 1
      %s23 = ssub.s32 %s15, %s22
      %p24 = scmp.eq.s32.totalorder %s23, 0
      %s26 = sadd.s32 %s25, 1
      %s27 = scalar_select %p24, %s25, %s26
      %p30 = pneg %p24
      %p31 = scmp.eq.s32.totalorder %s15, 1
      %p32 = por %p30, %p31
      %p33 = scmp.ne.s32.totalorder %s25, %s28
      %p34 = scmp.eq.s32.totalorder %s15, 0
      %p35 = por %p33, %p34
      %p36 = scmp.ne.s32.totalorder %s25, %s28
      %p37 = scmp.eq.s32.totalorder %s20, 1
      %p38 = por %p36, %p37
      %p39 = scmp.ne.s32.totalorder %s28, %s29
      %p40 = scmp.eq.s32.totalorder %s20, 0
      %p41 = por %p39, %p40
      %p42 = scmp.ne.s32.totalorder %s28, %s29
      %p43 = scmp.eq.s32.totalorder %s21, 1
      %p44 = por %p42, %p43
      %p46 = scmp.ne.s32.totalorder %s29, %s45
      %p47 = scmp.eq.s32.totalorder %s21, 0
      %p48 = por %p46, %p47
      %s50 = sadd.s32 %s49, 1
      %p53 = scmp.eq.s32.totalorder %s15, 1
      %p54 = scmp.ne.s32.totalorder %s49, %s51
      %p55 = scmp.eq.s32.totalorder %s15, 0
      %p56 = por %p54, %p55
      %p57 = scmp.ne.s32.totalorder %s49, %s51
      %p58 = scmp.eq.s32.totalorder %s20, 1
      %p59 = por %p57, %p58
      %p60 = scmp.ne.s32.totalorder %s51, %s52
      %p61 = scmp.eq.s32.totalorder %s20, 0
      %p62 = por %p60, %p61
      %p63 = scmp.ne.s32.totalorder %s51, %s52
      %p64 = scmp.eq.s32.totalorder %s21, 1
      %p65 = por %p63, %p64
      %p67 = scmp.ne.s32.totalorder %s52, %s66
      %p68 = scmp.eq.s32.totalorder %s21, 0
      %p69 = por %p67, %p68
      %s71 = sadd.s32 %s70, 1
      %p74 = scmp.eq.s32.totalorder %s15, 1
      %p75 = scmp.ne.s32.totalorder %s70, %s72
      %p76 = scmp.eq.s32.totalorder %s15, 0
      %p77 = por %p75, %p76
      %p78 = scmp.ne.s32.totalorder %s70, %s72
      %p79 = scmp.eq.s32.totalorder %s20, 1
      %p80 = por %p78, %p79
      %p81 = scmp.ne.s32.totalorder %s72, %s73
      %p82 = scmp.eq.s32.totalorder %s20, 0
      %p83 = por %p81, %p82
      %p84 = scmp.ne.s32.totalorder %s72, %s73
      %p85 = scmp.eq.s32.totalorder %s21, 1
      %p86 = por %p84, %p85
      %p88 = scmp.ne.s32.totalorder %s73, %s87
      %p89 = scmp.eq.s32.totalorder %s21, 0
      %p90 = por %p88, %p89
      %s91 = ssub.s32 %s15, %s22
      %p92 = scmp.eq.s32.totalorder %s91, 0
      %s94 = sadd.s32 %s93, 1
      %s95 = scalar_select %p92, %s93, %s94
      %p98 = pneg %p92
      %p99 = scmp.eq.s32.totalorder %s15, 1
      %p100 = por %p98, %p99
      %p101 = scmp.ne.s32.totalorder %s93, %s96
      %p102 = scmp.eq.s32.totalorder %s15, 0
      %p103 = por %p101, %p102
      %p104 = scmp.ne.s32.totalorder %s93, %s96
      %p105 = scmp.eq.s32.totalorder %s20, 1
      %p106 = por %p104, %p105
      %p107 = scmp.ne.s32.totalorder %s96, %s97
      %p108 = scmp.eq.s32.totalorder %s20, 0
      %p109 = por %p107, %p108
      %p110 = scmp.ne.s32.totalorder %s96, %s97
      %p111 = scmp.eq.s32.totalorder %s21, 1
      %p112 = por %p110, %p111
      %p114 = scmp.ne.s32.totalorder %s97, %s113
      %p115 = scmp.eq.s32.totalorder %s21, 0
      %p116 = por %p114, %p115
      %p117 = scmp.le.s32.totalorder 1, %s15
      %p118 = scmp.lt.s32.totalorder %s15, 3
      %p119 = pnand %p117, %p118
      %p120 = pneg %p119
      // Predicated region
      $region9: #{tpu_custom_call.1} parent=5 // pred_check
        _
      $region10: #{tpu_custom_call.1} parent=5 // pred_check_branch
        %122 = sbr.rel (%p119) target = $region12
      $region11: #{tpu_custom_call.1} parent=5 // pred_region
        %s123 = ssub.s32 %s15, 1
        // Predicated region
        $region13: #{tpu_custom_call.1} parent=11 // pred_check
          %p124 = pneg %p62
        $region14: #{tpu_custom_call.1} parent=11 // pred_check_branch
          %126 = sbr.rel (%p124) target = $region16
        $region15: #{tpu_custom_call.1} parent=11 // pred_region
          _
        $region16: #{tpu_custom_call.1} parent=11 // pred_fallthru
          _
        // Predicated region
        $region17: #{tpu_custom_call.1} parent=11 // pred_check
          %p127 = pneg %p83
        $region18: #{tpu_custom_call.1} parent=11 // pred_check_branch
          %129 = sbr.rel (%p127) target = $region20
        $region19: #{tpu_custom_call.1} parent=11 // pred_region
          _
        $region20: #{tpu_custom_call.1} parent=11 // pred_fallthru
          _
      $region12: #{tpu_custom_call.1} parent=5 // pred_fallthru
        _
      %p130 = scmp.lt.s32.totalorder %s15, 2
      // Predicated region
      $region21: #{tpu_custom_call.1} parent=5 // pred_check
        %p131 = pneg %p130
      $region22: #{tpu_custom_call.1} parent=5 // pred_check_branch
        %133 = sbr.rel (%p131) target = $region24
      $region23: #{tpu_custom_call.1} parent=5 // pred_region
        // Predicated region
        $region25: #{tpu_custom_call.1} parent=23 // pred_check
          %p134 = pneg %p35
        $region26: #{tpu_custom_call.1} parent=23 // pred_check_branch
          %136 = sbr.rel (%p134) target = $region28
        $region27: #{tpu_custom_call.1} parent=23 // pred_region
          %s137 = sand.u32 %s25, 1
          %s138 = scalar_lea.sflag [#allocation3], %s137
          %s139 = sand.u32 %s25, 1
          %s140 = smul.addr %s139, 64
          %s141 = scalar_lea.vmem [#allocation2], %s140
          %s142 = smul.u32 2, %s15
          %s144 = ssub.s32 1024, 1024
          %145 = vsyncadd %s138, %s144
          %s146 = smul.addr %s142, 4
          %s147 = smul.addr %s146, 128
          %s148 = scalar_lea.hbm %s0, %s147
          %s149 = sshll.u32 %s141, 4
          %s150 = int_to_ptr.vmem [resolvable:$true] %s149
          %155 = dma.hbm_to_vmem [thread:$0]  %s148, 1024, %s150, %s138, 128, 128, 8
        $region28: #{tpu_custom_call.1} parent=23 // pred_fallthru
          _
      $region24: #{tpu_custom_call.1} parent=5 // pred_fallthru
        _
      %p156 = scmp.le.s32.totalorder 1, %s15
      %p157 = scmp.lt.s32.totalorder %s15, 3
      %p158 = pnand %p156, %p157
      %p159 = pneg %p158
      // Predicated region
      $region29: #{tpu_custom_call.1} parent=5 // pred_check
        _
      $region30: #{tpu_custom_call.1} parent=5 // pred_check_branch
        %161 = sbr.rel (%p158) target = $region32
      $region31: #{tpu_custom_call.1} parent=5 // pred_region
        %s162 = ssub.s32 %s15, 1
        %s163 = sand.u32 %s28, 1
        %s164 = scalar_lea.sflag [#allocation3], %s163
        %s165 = sand.u32 %s28, 1
        %s166 = smul.addr %s165, 64
        %s167 = scalar_lea.vmem [#allocation2], %s166
        // Predicated region
        $region33: #{tpu_custom_call.1} parent=31 // pred_check
          %p168 = pneg %p41
        $region34: #{tpu_custom_call.1} parent=31 // pred_check_branch
          %170 = sbr.rel (%p168) target = $region36
        $region35: #{tpu_custom_call.1} parent=31 // pred_region
          %171 = dma.done %s164, 1024
        $region36: #{tpu_custom_call.1} parent=31 // pred_fallthru
          _
        %s172 = sand.u32 %s28, 1
        %s173 = scalar_lea.sflag [#allocation3], %s172
        %s174 = sand.u32 %s28, 1
        %s175 = smul.addr %s174, 64
        %s176 = scalar_lea.vmem [#allocation2], %s175
        %p177 = pneg %p41
        %p178 = pneg %p38
        %p179 = pneg %p62
        %p180 = pneg %p59
        %p181 = pneg %p83
        %p182 = pneg %p80
        %p183 = pneg %p109
        %p184 = pneg %p106
        %s185 = sand.u32 %s96, 1
        %s186 = scalar_lea.sflag [#allocation4], %s185
        %s187 = sand.u32 %s96, 1
        %s188 = smul.addr %s187, 64
        %s189 = scalar_lea.vmem [#allocation5], %s188
        %s190 = smul.u32 2, %s20
        %s191 = smul.u32 2, %s20
        %v192 = vld [vmem:[%s167] sm:$0xff]
        %v193 = vld [vmem:[%s167 + $0x8] sm:$0xff]
        %v194 = vld [vmem:[%s167 + $0x10] sm:$0xff]
        %v195 = vld [vmem:[%s167 + $0x18] sm:$0xff]
        %v196 = vld [vmem:[%s167 + $0x20] sm:$0xff]
        %v197 = vld [vmem:[%s167 + $0x28] sm:$0xff]
        %v198 = vld [vmem:[%s167 + $0x30] sm:$0xff]
        %v199 = vld [vmem:[%s167 + $0x38] sm:$0xff]
        %vm200 = vcmask 523264
        %v201 = vsel %vm200, %v192, 0.0
        %202 = vadd.xlane.f32.xlu0 %v201
        %v203 = vpop.xlane.xlu0 %202
        %v204 = vsel %vm200, %v193, 0.0
        %205 = vadd.xlane.f32.xlu0 %v204
        %v206 = vpop.xlane.xlu0 %205
        %v207 = vsel %vm200, %v194, 0.0
        %208 = vadd.xlane.f32.xlu0 %v207
        %v209 = vpop.xlane.xlu0 %208
        %v210 = vsel %vm200, %v195, 0.0
        %211 = vadd.xlane.f32.xlu0 %v210
        %v212 = vpop.xlane.xlu0 %211
        %v213 = vsel %vm200, %v196, 0.0
        %214 = vadd.xlane.f32.xlu0 %v213
        %v215 = vpop.xlane.xlu0 %214
        %v216 = vsel %vm200, %v197, 0.0
        %217 = vadd.xlane.f32.xlu0 %v216
        %v218 = vpop.xlane.xlu0 %217
        %v219 = vsel %vm200, %v198, 0.0
        %220 = vadd.xlane.f32.xlu0 %v219
        %v221 = vpop.xlane.xlu0 %220
        %v222 = vsel %vm200, %v199, 0.0
        %223 = vadd.xlane.f32.xlu0 %v222
        %v224 = vpop.xlane.xlu0 %223
        %v225 = vmul.f32 %v203, 0.015625
        %v226 = vmul.f32 %v206, 0.015625
        %v227 = vmul.f32 %v209, 0.015625
        %v228 = vmul.f32 %v212, 0.015625
        %v229 = vmul.f32 %v215, 0.015625
        %v230 = vmul.f32 %v218, 0.015625
        %v231 = vmul.f32 %v221, 0.015625
        %v232 = vmul.f32 %v224, 0.015625
        %v233 = vld [vmem:[%s1] sm:$0xff]
        %v234 = vld [vmem:[%s1 + $0x8] sm:$0xff]
        %v235 = vld [vmem:[%s1 + $0x10] sm:$0xff]
        %v236 = vld [vmem:[%s1 + $0x18] sm:$0xff]
        %v245 = vlaneseq
        %v246 = vand.u32 %v245, 127
        %v247 = vlaneseq
        %v248 = vshrl.u32 %v247, 7
        %v249 = vsub.s32 %v246, %v248
        %v250 = vrot.slane %v225, %v249
        %v251 = vadd.s32 %v246, 4294967288
        %v252 = vlaneseq
        %v253 = vshrl.u32 %v252, 7
        %v254 = vsub.s32 %v251, %v253
        %v255 = vrot.slane %v226, %v254
        %vm256 = vcmask 130112
        %v257 = vsel %vm256, %v255, %v250
        %v258 = vadd.s32 %v246, 4294967280
        %v259 = vlaneseq
        %v260 = vshrl.u32 %v259, 7
        %v261 = vsub.s32 %v258, %v260
        %v262 = vrot.slane %v227, %v261
        %vm263 = vcmask 195712
        %v264 = vsel %vm263, %v262, %v257
        %v265 = vadd.s32 %v246, 4294967272
        %v266 = vlaneseq
        %v267 = vshrl.u32 %v266, 7
        %v268 = vsub.s32 %v265, %v267
        %v269 = vrot.slane %v228, %v268
        %vm270 = vcmask 261312
        %v271 = vsel %vm270, %v269, %v264
        %v272 = vlaneseq
        %v273 = vshrl.u32 %v272, 7
        %v274 = vsub.s32 %v246, %v273
        %v275 = vrot.slane %v229, %v274
        %v276 = vlaneseq
        %v277 = vshrl.u32 %v276, 7
        %v278 = vsub.s32 %v251, %v277
        %v279 = vrot.slane %v230, %v278
        %v280 = vsel %vm256, %v279, %v275
        %v281 = vlaneseq
        %v282 = vshrl.u32 %v281, 7
        %v283 = vsub.s32 %v258, %v282
        %v284 = vrot.slane %v231, %v283
        %v285 = vsel %vm263, %v284, %v280
        %v286 = vlaneseq
        %v287 = vshrl.u32 %v286, 7
        %v288 = vsub.s32 %v265, %v287
        %v289 = vrot.slane %v232, %v288
        %v290 = vsel %vm270, %v289, %v285
        %vm291 = vcmask 1041409
        %v292 = vsel %vm291, %v290, %v271
        %vm293 = vcmask 261120
        %v294 = vsel %vm293, %v292, 0
        %296 = vmatprep.subr.mxu0 0.0
        %297 = vmatpush1.msra.mxu0 0.0
        %298 = vmatprep.subr.mxu0 0.0
        %299 = vmatpush1.msra.mxu0 0.0
        %300 = vmatprep.subr.mxu0 0.0
        %301 = vmatpush1.msra.mxu0 0.0
        %302 = vmatprep.subr.mxu0 0.0
        %303 = vmatpush1.msra.mxu0 0.0
        %304 = vmatprep.subr.mxu0 0.0
        %305 = vmatpush1.msra.mxu0 0.0
        %306 = vmatprep.subr.mxu0 0.0
        %307 = vmatpush1.msra.mxu0 0.0
        %308 = vmatprep.subr.mxu0 0.0
        %309 = vmatpush1.msra.mxu0 0.0
        %310 = vmatprep.subr.mxu0 0.0
        %311 = vmatpush1.msra.mxu0 0.0
        %312 = vmatprep.subr.mxu0 0.0
        %313 = vmatpush1.msra.mxu0 0.0
        %314 = vmatprep.subr.mxu0 0.0
        %315 = vmatpush1.msra.mxu0 0.0
        %316 = vmatprep.subr.mxu0 0.0
        %317 = vmatpush1.msra.mxu0 0.0
        %318 = vmatprep.subr.mxu0 0.0
        %319 = vmatpush1.msra.mxu0 0.0
        %320 = vmatprep.subr.mxu0 0.0
        %321 = vmatpush1.msra.mxu0 %v236
        %322 = vmatprep.subr.mxu0 0.0
        %323 = vmatpush1.msra.mxu0 %v235
        %324 = vmatprep.subr.mxu0 0.0
        %325 = vmatpush1.msra.mxu0 %v234
        %326 = vmatprep.subr.mxu0 0.0
        %327 = vmatpush1.msra.mxu0 %v233
        %328 = vmatprep.subr.mxu0 0.0
        %329 = vmatpush2.msra.mxu0 0.0
        %330 = vmatprep.subr.mxu0 0.0
        %331 = vmatpush2.msra.mxu0 0.0
        %332 = vmatprep.subr.mxu0 0.0
        %333 = vmatpush2.msra.mxu0 0.0
        %334 = vmatprep.subr.mxu0 0.0
        %335 = vmatpush2.msra.mxu0 0.0
        %336 = vmatprep.subr.mxu0 0.0
        %337 = vmatpush2.msra.mxu0 0.0
        %338 = vmatprep.subr.mxu0 0.0
        %339 = vmatpush2.msra.mxu0 0.0
        %340 = vmatprep.subr.mxu0 0.0
        %341 = vmatpush2.msra.mxu0 0.0
        %342 = vmatprep.subr.mxu0 0.0
        %343 = vmatpush2.msra.mxu0 0.0
        %344 = vmatprep.subr.mxu0 0.0
        %345 = vmatpush2.msra.mxu0 0.0
        %346 = vmatprep.subr.mxu0 0.0
        %347 = vmatpush2.msra.mxu0 0.0
        %348 = vmatprep.subr.mxu0 0.0
        %349 = vmatpush2.msra.mxu0 0.0
        %350 = vmatprep.subr.mxu0 0.0
        %351 = vmatpush2.msra.mxu0 0.0
        %352 = vmatprep.subr.mxu0 0.0
        %353 = vmatpush2.msra.mxu0 0.0
        %354 = vmatprep.subr.mxu0 0.0
        %355 = vmatpush2.msra.mxu0 0.0
        %356 = vmatprep.subr.mxu0 0.0
        %357 = vmatpush2.msra.mxu0 0.0
        %358 = vmatprep.subr.mxu0 0.0
        %359 = vmatpush2.msra.mxu0 0.0
        %360 = vmatprep.mubr.f32.mxu0 0.0
        %361 = vmatmul.mubr.f32.gmra.mxu0 %v294
        %v362 = vpop.f32.mrf.mxu0
        %v363 = vadd.f32 0.0, %v362
        %v364 = vpop.f32.mrf.mxu0
        %365 = vdwg.mxu0
        %v366 = vmax.f32 %v363, 0.0
        %v367 = vld [vmem:[%s2] sm:$0x3]
        %vm368 = vcmask 15360
        %v370 = vsel %vm368, %v366, 0
        %vm372 = vcmask 1041408
        %v374 = vsel %vm372, %v367, 0
        %376 = vmatprep.subr.mxu0 0.0
        %377 = vmatpush1.msra.mxu0 0.0
        %378 = vmatprep.subr.mxu0 0.0
        %379 = vmatpush1.msra.mxu0 0.0
        %380 = vmatprep.subr.mxu0 0.0
        %381 = vmatpush1.msra.mxu0 0.0
        %382 = vmatprep.subr.mxu0 0.0
        %383 = vmatpush1.msra.mxu0 0.0
        %384 = vmatprep.subr.mxu0 0.0
        %385 = vmatpush1.msra.mxu0 0.0
        %386 = vmatprep.subr.mxu0 0.0
        %387 = vmatpush1.msra.mxu0 0.0
        %388 = vmatprep.subr.mxu0 0.0
        %389 = vmatpush1.msra.mxu0 0.0
        %390 = vmatprep.subr.mxu0 0.0
        %391 = vmatpush1.msra.mxu0 0.0
        %392 = vmatprep.subr.mxu0 0.0
        %393 = vmatpush1.msra.mxu0 0.0
        %394 = vmatprep.subr.mxu0 0.0
        %395 = vmatpush1.msra.mxu0 0.0
        %396 = vmatprep.subr.mxu0 0.0
        %397 = vmatpush1.msra.mxu0 0.0
        %398 = vmatprep.subr.mxu0 0.0
        %399 = vmatpush1.msra.mxu0 0.0
        %400 = vmatprep.subr.mxu0 0.0
        %401 = vmatpush1.msra.mxu0 0.0
        %402 = vmatprep.subr.mxu0 0.0
        %403 = vmatpush1.msra.mxu0 0.0
        %404 = vmatprep.subr.mxu0 0.0
        %405 = vmatpush1.msra.mxu0 0.0
        %406 = vmatprep.subr.mxu0 0.0
        %407 = vmatpush1.msra.mxu0 %v374
        %408 = vmatprep.subr.mxu0 0.0
        %409 = vmatpush2.msra.mxu0 0.0
        %410 = vmatprep.subr.mxu0 0.0
        %411 = vmatpush2.msra.mxu0 0.0
        %412 = vmatprep.subr.mxu0 0.0
        %413 = vmatpush2.msra.mxu0 0.0
        %414 = vmatprep.subr.mxu0 0.0
        %415 = vmatpush2.msra.mxu0 0.0
        %416 = vmatprep.subr.mxu0 0.0
        %417 = vmatpush2.msra.mxu0 0.0
        %418 = vmatprep.subr.mxu0 0.0
        %419 = vmatpush2.msra.mxu0 0.0
        %420 = vmatprep.subr.mxu0 0.0
        %421 = vmatpush2.msra.mxu0 0.0
        %422 = vmatprep.subr.mxu0 0.0
        %423 = vmatpush2.msra.mxu0 0.0
        %424 = vmatprep.subr.mxu0 0.0
        %425 = vmatpush2.msra.mxu0 0.0
        %426 = vmatprep.subr.mxu0 0.0
        %427 = vmatpush2.msra.mxu0 0.0
        %428 = vmatprep.subr.mxu0 0.0
        %429 = vmatpush2.msra.mxu0 0.0
        %430 = vmatprep.subr.mxu0 0.0
        %431 = vmatpush2.msra.mxu0 0.0
        %432 = vmatprep.subr.mxu0 0.0
        %433 = vmatpush2.msra.mxu0 0.0
        %434 = vmatprep.subr.mxu0 0.0
        %435 = vmatpush2.msra.mxu0 0.0
        %436 = vmatprep.subr.mxu0 0.0
        %437 = vmatpush2.msra.mxu0 0.0
        %438 = vmatprep.subr.mxu0 0.0
        %439 = vmatpush2.msra.mxu0 0.0
        %440 = vmatprep.mubr.f32.mxu0 0.0
        %441 = vmatmul.mubr.f32.gmra.mxu0 %v370
        %v442 = vpop.f32.mrf.mxu0
        %v443 = vadd.f32 0.0, %v442
        %v444 = vpop.f32.mrf.mxu0
        %445 = vdwg.mxu0
        %v446 = vxor.u32 %v443, 2147483648
        %v447 = vmul.f32 %v446, 1.442695
        %v448 = vpow.pop %v447
        %v449 = vadd.f32 %v448, 1.0
        %v450 = vrcp.pop %v449
        %v451 = vmul.f32 1.0, %v450
        %v452 = vlaneseq
        %v453 = vshrl.u32 %v452, 7
        %v454 = vsub.s32 0, %v453
        %v455 = vrot.slane %v451, %v454
        %457 = vbcast.lane.b32.xlu0 %v455, 256
        %v458 = vpop.permute.xlu0 %457
        %s460 = sor.u32 256, 8
        %461 = vbcast.lane.b32.xlu0 %v455, %s460
        %v462 = vpop.permute.xlu0 %461
        %s464 = sor.u32 256, 16
        %465 = vbcast.lane.b32.xlu0 %v455, %s464
        %v466 = vpop.permute.xlu0 %465
        %s468 = sor.u32 256, 24
        %469 = vbcast.lane.b32.xlu0 %v455, %s468
        %v470 = vpop.permute.xlu0 %469
        %v471 = vlaneseq
        %v472 = vshrl.u32 %v471, 7
        %v473 = vsub.s32 1, %v472
        %v474 = vrot.slane %v451, %v473
        %476 = vbcast.lane.b32.xlu0 %v474, 256
        %v477 = vpop.permute.xlu0 %476
        %s479 = sor.u32 256, 8
        %480 = vbcast.lane.b32.xlu0 %v474, %s479
        %v481 = vpop.permute.xlu0 %480
        %s483 = sor.u32 256, 16
        %484 = vbcast.lane.b32.xlu0 %v474, %s483
        %v485 = vpop.permute.xlu0 %484
        %s487 = sor.u32 256, 24
        %488 = vbcast.lane.b32.xlu0 %v474, %s487
        %v489 = vpop.permute.xlu0 %488
        %v490 = vmul.f32 %v192, %v458
        %v491 = vmul.f32 %v193, %v462
        %v492 = vmul.f32 %v194, %v466
        %v493 = vmul.f32 %v195, %v470
        %v494 = vmul.f32 %v196, %v477
        %v495 = vmul.f32 %v197, %v481
        %v496 = vmul.f32 %v198, %v485
        %v497 = vmul.f32 %v199, %v489
        %498 = vst.msk [vmem:[%s189] sm:$0xff] %vm200, %v490
        %499 = vst.msk [vmem:[%s189 + $0x8] sm:$0xff] %vm200, %v491
        %500 = vst.msk [vmem:[%s189 + $0x10] sm:$0xff] %vm200, %v492
        %501 = vst.msk [vmem:[%s189 + $0x18] sm:$0xff] %vm200, %v493
        %502 = vst.msk [vmem:[%s189 + $0x20] sm:$0xff] %vm200, %v494
        %503 = vst.msk [vmem:[%s189 + $0x28] sm:$0xff] %vm200, %v495
        %504 = vst.msk [vmem:[%s189 + $0x30] sm:$0xff] %vm200, %v496
        %505 = vst.msk [vmem:[%s189 + $0x38] sm:$0xff] %vm200, %v497
        %s506 = sand.u32 %s96, 1
        %s507 = scalar_lea.sflag [#allocation4], %s506
        %s508 = sand.u32 %s96, 1
        %s509 = smul.addr %s508, 64
        %s510 = scalar_lea.vmem [#allocation5], %s509
        // Predicated region
        $region37: #{tpu_custom_call.1} parent=31 // pred_check
          %p511 = pneg %p106
        $region38: #{tpu_custom_call.1} parent=31 // pred_check_branch
          %513 = sbr.rel (%p511) target = $region40
        $region39: #{tpu_custom_call.1} parent=31 // pred_region
          %s514 = smul.u32 2, %s20
          %s516 = ssub.s32 1024, 1024
          %517 = vsyncadd %s507, %s516
          %s518 = smul.addr %s514, 4
          %s519 = smul.addr %s518, 128
          %s520 = scalar_lea.hbm %s3, %s519
          %s521 = sshll.u32 %s510, 4
          %s522 = int_to_ptr.vmem [resolvable:$true] %s521
          %527 = dma.vmem_to_hbm [thread:$0]  %s522, 1024, %s520, %s507, 128, 128, 8
        $region40: #{tpu_custom_call.1} parent=31 // pred_fallthru
          _
      $region32: #{tpu_custom_call.1} parent=5 // pred_fallthru
        _
      %p528 = scmp.le.s32.totalorder 2, %s15
      // Predicated region
      $region41: #{tpu_custom_call.1} parent=5 // pred_check
        %p529 = pneg %p528
      $region42: #{tpu_custom_call.1} parent=5 // pred_check_branch
        %531 = sbr.rel (%p529) target = $region44
      $region43: #{tpu_custom_call.1} parent=5 // pred_region
        %s532 = ssub.s32 %s15, 2
        // Predicated region
        $region45: #{tpu_custom_call.1} parent=43 // pred_check
          %p533 = pneg %p112
        $region46: #{tpu_custom_call.1} parent=43 // pred_check_branch
          %535 = sbr.rel (%p533) target = $region48
        $region47: #{tpu_custom_call.1} parent=43 // pred_region
          %s536 = sand.u32 %s97, 1
          %s537 = scalar_lea.sflag [#allocation4], %s536
          %s538 = sand.u32 %s97, 1
          %s539 = smul.addr %s538, 64
          %s540 = scalar_lea.vmem [#allocation5], %s539
          %541 = dma.done %s537, 1024
        $region48: #{tpu_custom_call.1} parent=43 // pred_fallthru
          _
      $region44: #{tpu_custom_call.1} parent=5 // pred_fallthru
        _
    $region6: #{tpu_custom_call.1} parent=1 // loop_footer
      %s19 = sadd.s32 1, %s15
    $region7: #{tpu_custom_call.1} parent=1 // loop_footer_branch
      %14 = sbr.rel target = $region3
    $region8: #{tpu_custom_call.1} parent=1 // loop_exit
      _
    %542 = vsyncpa [#allocation3], 1
    %s543 = scalar_lea.sflag [#allocation3], 1
    %544 = vsyncpa %s543, 1
    %545 = vsyncpa [#allocation4], 1
    %s546 = scalar_lea.sflag [#allocation4], 1
    %547 = vsyncpa %s546, 1

</llo_original>
